<compile_context>
chip_gen: v5e
topology: v5e:2x2
jax: 0.10.0
libtpu: 0.0.40
codegen_flags: <defaults>
</compile_context>

<pallas_src>
import jax
import jax.numpy as jnp
from jax.experimental import pallas as pl
from jax.experimental.pallas import tpu as pltpu


def _round_up(n, m):
    return ((n + m - 1) // m) * m


def _mlp_kernel(x_ref,
                w1_ref, b1_ref,
                w2_ref, b2_ref,
                w3_ref, b3_ref,
                w4_ref, b4_ref,
                o_ref):
    # Whole hot path (4 matmuls + bias + ReLU) fused, weights as MXU LHS.
    x = x_ref[...]                                                  # (5, tn)
    h = jnp.dot(w1_ref[...], x, preferred_element_type=jnp.float32) + b1_ref[...]
    h = jnp.maximum(h, 0.0)
    # drop_layer -> identity (inference)
    h = jnp.dot(w2_ref[...], h, preferred_element_type=jnp.float32) + b2_ref[...]
    h = jnp.maximum(h, 0.0)
    h = jnp.dot(w3_ref[...], h, preferred_element_type=jnp.float32) + b3_ref[...]
    h = jnp.maximum(h, 0.0)
    out = jnp.dot(w4_ref[...], h, preferred_element_type=jnp.float32) + b4_ref[...]
    o_ref[...] = out.astype(o_ref.dtype)                            # (2, tn)


def rgb2normnet_forward(x, params, *, tile_n=2048):
    """x: [N, 5] float32.  Returns [N, 2] float32 (matches PyTorch forward)."""
    N, F_in = x.shape
    assert F_in == 5
    (w1, b1), (w2, b2), (w3, b3), (w4, b4) = params

    # Lane tile: multiple of 128, at most tile_n; aim for >=2 grid steps so a
    # v7x chip can shard the "parallel" axis across both TensorCores.
    tn = min(tile_n, max(128, _round_up(pl.cdiv(N, 2), 128)))
    n_pad = _round_up(N, tn)
    grid = n_pad // tn

    # Feature-major input: [5, N_pad]; zero-pad extra columns (sliced off below).
    xT = x.T
    if n_pad != N:
        xT = jnp.pad(xT, ((0, 0), (0, n_pad - N)))

    # Biases as column vectors so they broadcast across the lane (batch) axis.
    b1c = b1.reshape(-1, 1)
    b2c = b2.reshape(-1, 1)
    b3c = b3.reshape(-1, 1)
    b4c = b4.reshape(-1, 1)

    # Weights/biases are tiny -> full (untiled) blocks, resident in VMEM.
    full = lambda a: pl.BlockSpec(a.shape, lambda i: (0, 0))

    out_T = pl.pallas_call(
        _mlp_kernel,
        out_shape=jax.ShapeDtypeStruct((2, n_pad), jnp.float32),
        grid_spec=pltpu.PrefetchScalarGridSpec(
            num_scalar_prefetch=0,
            grid=(grid,),
            in_specs=[
                pl.BlockSpec((5, tn), lambda i: (0, i)),   # x columns tile
                full(w1), full(b1c),
                full(w2), full(b2c),
                full(w3), full(b3c),
                full(w4), full(b4c),
            ],
            out_specs=pl.BlockSpec((2, tn), lambda i: (0, i)),  # lane-dense out
        ),
        compiler_params=pltpu.CompilerParams(
            dimension_semantics=("parallel",)),
    )(xT, w1, b1c, w2, b2c, w3, b3c, w4, b4c)

    return out_T[:, :N].T                                          # (N, 2)


def init_params(key):
    """Deterministic init matching nn.Linear: W (out,in), b (out,)."""
    sizes = [(5, 64), (64, 64), (64, 64), (64, 2)]
    params = []
    for fan_in, fan_out in sizes:
        kw, kb, key = jax.random.split(key, 3)
        bound = 1.0 / jnp.sqrt(float(fan_in))  # PyTorch Linear default range
        w = jax.random.uniform(kw, (fan_out, fan_in), jnp.float32, -bound, bound)
        b = jax.random.uniform(kb, (fan_out,), jnp.float32, -bound, bound)
        params.append((w, b))
    return params


def _ref_forward(x, params):
    (w1, b1), (w2, b2), (w3, b3), (w4, b4) = params
    h = jnp.maximum(x @ w1.T + b1, 0.0)
    h = jnp.maximum(h @ w2.T + b2, 0.0)
    h = jnp.maximum(h @ w3.T + b3, 0.0)
    return h @ w4.T + b4


if __name__ == "__main__":
    key = jax.random.PRNGKey(0)
    kx, kp = jax.random.split(key)

    N = 300  # flattened batch of pixels; deliberately not a multiple of 128
    x = jax.random.normal(kx, (N, 5), jnp.float32)
    params = init_params(kp)

    out = rgb2normnet_forward(x, params)
    out = jax.block_until_ready(out)

    ref = _ref_forward(x, params)
    assert out.shape == (N, 2)
    assert jnp.max(jnp.abs(out - ref)) < 1e-4

    print("KERNEL_OK")
</pallas_src>

<mosaic_0001>
module attributes {stable_mosaic.version = 11 : i64} {
  func.func @_mlp_kernel(%arg0: i32, %arg1: memref<5x256xf32, #tpu.memory_space<vmem>>, %arg2: memref<64x5xf32, #tpu.memory_space<vmem>>, %arg3: memref<64x1xf32, #tpu.memory_space<vmem>>, %arg4: memref<64x64xf32, #tpu.memory_space<vmem>>, %arg5: memref<64x1xf32, #tpu.memory_space<vmem>>, %arg6: memref<64x64xf32, #tpu.memory_space<vmem>>, %arg7: memref<64x1xf32, #tpu.memory_space<vmem>>, %arg8: memref<2x64xf32, #tpu.memory_space<vmem>>, %arg9: memref<2x1xf32, #tpu.memory_space<vmem>>, %arg10: memref<2x256xf32, #tpu.memory_space<vmem>>) attributes {dimension_semantics = [#tpu.dimension_semantics<parallel>], iteration_bounds = array<i64: 2>, scalar_prefetch = 0 : i64, scratch_operands = 0 : i64, tpu.core_type = #tpu.core_type<tc>, window_params = [{transform_indices = @transform_0, window_bounds = array<i64: 5, 256>}, {pipeline_mode = #tpu.pipeline_mode<synchronous>, transform_indices = @transform_1, window_bounds = array<i64: 64, 5>}, {pipeline_mode = #tpu.pipeline_mode<synchronous>, transform_indices = @transform_2, window_bounds = array<i64: 64, 1>}, {pipeline_mode = #tpu.pipeline_mode<synchronous>, transform_indices = @transform_3, window_bounds = array<i64: 64, 64>}, {pipeline_mode = #tpu.pipeline_mode<synchronous>, transform_indices = @transform_4, window_bounds = array<i64: 64, 1>}, {pipeline_mode = #tpu.pipeline_mode<synchronous>, transform_indices = @transform_5, window_bounds = array<i64: 64, 64>}, {pipeline_mode = #tpu.pipeline_mode<synchronous>, transform_indices = @transform_6, window_bounds = array<i64: 64, 1>}, {pipeline_mode = #tpu.pipeline_mode<synchronous>, transform_indices = @transform_7, window_bounds = array<i64: 2, 64>}, {pipeline_mode = #tpu.pipeline_mode<synchronous>, transform_indices = @transform_8, window_bounds = array<i64: 2, 1>}, {transform_indices = @transform_9, window_bounds = array<i64: 2, 256>}]} {
    %c0 = arith.constant 0 : index
    %c0_0 = arith.constant 0 : index
    %0 = vector.load %arg1[%c0, %c0_0] : memref<5x256xf32, #tpu.memory_space<vmem>>, vector<5x256xf32>
    %c0_1 = arith.constant 0 : index
    %c0_2 = arith.constant 0 : index
    %1 = vector.load %arg2[%c0_1, %c0_2] : memref<64x5xf32, #tpu.memory_space<vmem>>, vector<64x5xf32>
    %cst = arith.constant dense<0.000000e+00> : vector<64x256xf32>
    %2 = tpu.matmul %1, %0, %cst {dimension_numbers = #tpu.dot_dimension_numbers<[1], [0], [0], [1], [0, 0, 1, 1], [], []>} : vector<64x5xf32>, vector<5x256xf32>, vector<64x256xf32> -> vector<64x256xf32>
    %c0_3 = arith.constant 0 : index
    %c0_4 = arith.constant 0 : index
    %3 = vector.load %arg3[%c0_3, %c0_4] : memref<64x1xf32, #tpu.memory_space<vmem>>, vector<64x1xf32>
    %4 = vector.broadcast %3 : vector<64x1xf32> to vector<64x256xf32>
    %5 = arith.addf %2, %4 : vector<64x256xf32>
    %cst_5 = arith.constant 0.000000e+00 : f32
    %6 = vector.broadcast %cst_5 : f32 to vector<64x256xf32>
    %7 = arith.maximumf %5, %6 : vector<64x256xf32>
    %c0_6 = arith.constant 0 : index
    %c0_7 = arith.constant 0 : index
    %8 = vector.load %arg4[%c0_6, %c0_7] : memref<64x64xf32, #tpu.memory_space<vmem>>, vector<64x64xf32>
    %cst_8 = arith.constant dense<0.000000e+00> : vector<64x256xf32>
    %9 = tpu.matmul %8, %7, %cst_8 {dimension_numbers = #tpu.dot_dimension_numbers<[1], [0], [0], [1], [0, 0, 1, 1], [], []>} : vector<64x64xf32>, vector<64x256xf32>, vector<64x256xf32> -> vector<64x256xf32>
    %c0_9 = arith.constant 0 : index
    %c0_10 = arith.constant 0 : index
    %10 = vector.load %arg5[%c0_9, %c0_10] : memref<64x1xf32, #tpu.memory_space<vmem>>, vector<64x1xf32>
    %11 = vector.broadcast %10 : vector<64x1xf32> to vector<64x256xf32>
    %12 = arith.addf %9, %11 : vector<64x256xf32>
    %cst_11 = arith.constant 0.000000e+00 : f32
    %13 = vector.broadcast %cst_11 : f32 to vector<64x256xf32>
    %14 = arith.maximumf %12, %13 : vector<64x256xf32>
    %c0_12 = arith.constant 0 : index
    %c0_13 = arith.constant 0 : index
    %15 = vector.load %arg6[%c0_12, %c0_13] : memref<64x64xf32, #tpu.memory_space<vmem>>, vector<64x64xf32>
    %cst_14 = arith.constant dense<0.000000e+00> : vector<64x256xf32>
    %16 = tpu.matmul %15, %14, %cst_14 {dimension_numbers = #tpu.dot_dimension_numbers<[1], [0], [0], [1], [0, 0, 1, 1], [], []>} : vector<64x64xf32>, vector<64x256xf32>, vector<64x256xf32> -> vector<64x256xf32>
    %c0_15 = arith.constant 0 : index
    %c0_16 = arith.constant 0 : index
    %17 = vector.load %arg7[%c0_15, %c0_16] : memref<64x1xf32, #tpu.memory_space<vmem>>, vector<64x1xf32>
    %18 = vector.broadcast %17 : vector<64x1xf32> to vector<64x256xf32>
    %19 = arith.addf %16, %18 : vector<64x256xf32>
    %cst_17 = arith.constant 0.000000e+00 : f32
    %20 = vector.broadcast %cst_17 : f32 to vector<64x256xf32>
    %21 = arith.maximumf %19, %20 : vector<64x256xf32>
    %c0_18 = arith.constant 0 : index
    %c0_19 = arith.constant 0 : index
    %22 = vector.load %arg8[%c0_18, %c0_19] : memref<2x64xf32, #tpu.memory_space<vmem>>, vector<2x64xf32>
    %cst_20 = arith.constant dense<0.000000e+00> : vector<2x256xf32>
    %23 = tpu.matmul %22, %21, %cst_20 {dimension_numbers = #tpu.dot_dimension_numbers<[1], [0], [0], [1], [0, 0, 1, 1], [], []>} : vector<2x64xf32>, vector<64x256xf32>, vector<2x256xf32> -> vector<2x256xf32>
    %c0_21 = arith.constant 0 : index
    %c0_22 = arith.constant 0 : index
    %24 = vector.load %arg9[%c0_21, %c0_22] : memref<2x1xf32, #tpu.memory_space<vmem>>, vector<2x1xf32>
    %25 = vector.broadcast %24 : vector<2x1xf32> to vector<2x256xf32>
    %26 = arith.addf %23, %25 : vector<2x256xf32>
    %c0_23 = arith.constant 0 : index
    %c0_24 = arith.constant 0 : index
    %27 = vector.load %arg10[%c0_23, %c0_24] : memref<2x256xf32, #tpu.memory_space<vmem>>, vector<2x256xf32>
    tpu.vector_store %arg10[%c0_23, %c0_24], %26 {strides = array<i32>} : memref<2x256xf32, #tpu.memory_space<vmem>>, vector<2x256xf32>,
    return
  }
  func.func @transform_0(%arg0: i32) -> (i32, i32) {
    %c0_i32 = arith.constant 0 : i32
    %c0_i32_0 = arith.constant 0 : i32
    return %c0_i32, %arg0 : i32, i32
  }
  func.func @transform_1(%arg0: i32) -> (i32, i32) {
    %c0_i32 = arith.constant 0 : i32
    %c0_i32_0 = arith.constant 0 : i32
    %c0_i32_1 = arith.constant 0 : i32
    return %c0_i32, %c0_i32_0 : i32, i32
  }
  func.func @transform_2(%arg0: i32) -> (i32, i32) {
    %c0_i32 = arith.constant 0 : i32
    %c0_i32_0 = arith.constant 0 : i32
    %c0_i32_1 = arith.constant 0 : i32
    return %c0_i32, %c0_i32_0 : i32, i32
  }
  func.func @transform_3(%arg0: i32) -> (i32, i32) {
    %c0_i32 = arith.constant 0 : i32
    %c0_i32_0 = arith.constant 0 : i32
    %c0_i32_1 = arith.constant 0 : i32
    return %c0_i32, %c0_i32_0 : i32, i32
  }
  func.func @transform_4(%arg0: i32) -> (i32, i32) {
    %c0_i32 = arith.constant 0 : i32
    %c0_i32_0 = arith.constant 0 : i32
    %c0_i32_1 = arith.constant 0 : i32
    return %c0_i32, %c0_i32_0 : i32, i32
  }
  func.func @transform_5(%arg0: i32) -> (i32, i32) {
    %c0_i32 = arith.constant 0 : i32
    %c0_i32_0 = arith.constant 0 : i32
    %c0_i32_1 = arith.constant 0 : i32
    return %c0_i32, %c0_i32_0 : i32, i32
  }
  func.func @transform_6(%arg0: i32) -> (i32, i32) {
    %c0_i32 = arith.constant 0 : i32
    %c0_i32_0 = arith.constant 0 : i32
    %c0_i32_1 = arith.constant 0 : i32
    return %c0_i32, %c0_i32_0 : i32, i32
  }
  func.func @transform_7(%arg0: i32) -> (i32, i32) {
    %c0_i32 = arith.constant 0 : i32
    %c0_i32_0 = arith.constant 0 : i32
    %c0_i32_1 = arith.constant 0 : i32
    return %c0_i32, %c0_i32_0 : i32, i32
  }
  func.func @transform_8(%arg0: i32) -> (i32, i32) {
    %c0_i32 = arith.constant 0 : i32
    %c0_i32_0 = arith.constant 0 : i32
    %c0_i32_1 = arith.constant 0 : i32
    return %c0_i32, %c0_i32_0 : i32, i32
  }
  func.func @transform_9(%arg0: i32) -> (i32, i32) {
    %c0_i32 = arith.constant 0 : i32
    %c0_i32_0 = arith.constant 0 : i32
    return %c0_i32, %arg0 : i32, i32
  }
}

</mosaic_0001>

<llo_original>
// kernel: tpu_custom_call.1
$region0: #{tpu_custom_call.1}
  #allocation0 [shape = 'u32[]', space=smem, size = 0x4, offset = 0x4, fixed_abs, tag = 'smem constant byte address 0x4 - core index']
  #allocation1 [shape = 'u32[72,128]{1,0:T(1,128)}', space=vmem, size = 0x9000, scoped, tag = 'internal scratch']
  %s0 = inlined_call_operand.vmem [shape: f32[5,512], index: 0, kind: input, shape index: {}]
  %s1 = inlined_call_operand.vmem [shape: f32[64,5], index: 1, kind: input, shape index: {}]
  %s2 = inlined_call_operand.vmem [shape: f32[64,1], index: 2, kind: input, shape index: {}]
  %s3 = inlined_call_operand.vmem [shape: f32[64,64], index: 3, kind: input, shape index: {}]
  %s4 = inlined_call_operand.vmem [shape: f32[64,1], index: 4, kind: input, shape index: {}]
  %s5 = inlined_call_operand.vmem [shape: f32[64,64], index: 5, kind: input, shape index: {}]
  %s6 = inlined_call_operand.vmem [shape: f32[64,1], index: 6, kind: input, shape index: {}]
  %s7 = inlined_call_operand.vmem [shape: f32[2,64], index: 7, kind: input, shape index: {}]
  %s8 = inlined_call_operand.vmem [shape: f32[2,1], index: 8, kind: input, shape index: {}]
  %s9 = inlined_call_operand.hbm [shape: f32[2,512], index: 9, kind: output, shape index: {}]
  %s10 = sld [smem:[#allocation0]]
  $region69: #{tpu_custom_call.1} parent=0
    _
  %s12 = ssub.s32 1, %s10
  %s13 = scalar_select 0, %s12, %s10
  $region1: #{tpu_custom_call.1} parent=0
    #allocation2 [shape = 'u8[4096]{0}', space=vmem, size = 0x1000, scoped, tag = 'output window, operand 0']
    #allocation3 [shape = 's32[2]{0}', space=sflag, size = 0x8, scoped, tag = 'scoped memory for tpu_custom_call.1']
    %14 = vsyncpa [#allocation3], 0
    %s15 = scalar_lea.sflag [#allocation3], 1
    %16 = vsyncpa %s15, 0
    loop: start=0, step=1, limit=4
    $region2: #{tpu_custom_call.1} parent=1 // loop_pre_header
      _
    $region3: #{tpu_custom_call.1} parent=1 // loop_header
      %s18 = sphi 0, %s22
      %p19 = scmp.ge.s32.totalorder %s18, 4
      %s28 = sphi 0, %s30
      %s31 = sphi 0, %s28
      %s32 = sphi 0, %s31
      %s48 = sphi 0, %s32
      %s52 = sphi 0, %s52
      %s54 = sphi 0, %s52
      %s55 = sphi 0, %s54
      %s69 = sphi 0, %s55
      %s73 = sphi 0, %s73
      %s75 = sphi 0, %s73
      %s76 = sphi 0, %s75
      %s90 = sphi 0, %s76
      %s94 = sphi 0, %s94
      %s96 = sphi 0, %s94
      %s97 = sphi 0, %s96
      %s111 = sphi 0, %s97
      %s115 = sphi 0, %s115
      %s117 = sphi 0, %s115
      %s118 = sphi 0, %s117
      %s132 = sphi 0, %s118
      %s136 = sphi 0, %s136
      %s138 = sphi 0, %s136
      %s139 = sphi 0, %s138
      %s153 = sphi 0, %s139
      %s157 = sphi 0, %s157
      %s159 = sphi 0, %s157
      %s160 = sphi 0, %s159
      %s174 = sphi 0, %s160
      %s178 = sphi 0, %s178
      %s180 = sphi 0, %s178
      %s181 = sphi 0, %s180
      %s195 = sphi 0, %s181
      %s199 = sphi 0, %s199
      %s201 = sphi 0, %s199
      %s202 = sphi 0, %s201
      %s216 = sphi 0, %s202
      %s222 = sphi 0, %s224
      %s225 = sphi 0, %s222
      %s226 = sphi 0, %s225
      %s242 = sphi 0, %s226
    $region4: #{tpu_custom_call.1} parent=1 // loop_header_branch
      %21 = sbr.rel (%p19) target = $region8
    $region5: #{tpu_custom_call.1} parent=1 // loop_body
      %s23 = ssub.s32 %s18, 1
      %s24 = ssub.s32 %s18, 2
      %s25 = sadd.s32 %s18, 1
      %s26 = ssub.s32 %s18, %s25
      %p27 = scmp.eq.s32.totalorder %s26, 0
      %s29 = sadd.s32 %s28, 1
      %s30 = scalar_select %p27, %s28, %s29
      %p33 = pneg %p27
      %p34 = scmp.eq.s32.totalorder %s18, 1
      %p35 = por %p33, %p34
      %p36 = scmp.ne.s32.totalorder %s28, %s31
      %p37 = scmp.eq.s32.totalorder %s18, 0
      %p38 = por %p36, %p37
      %p39 = scmp.ne.s32.totalorder %s28, %s31
      %p40 = scmp.eq.s32.totalorder %s23, 1
      %p41 = por %p39, %p40
      %p42 = scmp.ne.s32.totalorder %s31, %s32
      %p43 = scmp.eq.s32.totalorder %s23, 0
      %p44 = por %p42, %p43
      %p45 = scmp.ne.s32.totalorder %s31, %s32
      %p46 = scmp.eq.s32.totalorder %s24, 1
      %p47 = por %p45, %p46
      %p49 = scmp.ne.s32.totalorder %s32, %s48
      %p50 = scmp.eq.s32.totalorder %s24, 0
      %p51 = por %p49, %p50
      %s53 = sadd.s32 %s52, 1
      %p56 = scmp.eq.s32.totalorder %s18, 1
      %p57 = scmp.ne.s32.totalorder %s52, %s54
      %p58 = scmp.eq.s32.totalorder %s18, 0
      %p59 = por %p57, %p58
      %p60 = scmp.ne.s32.totalorder %s52, %s54
      %p61 = scmp.eq.s32.totalorder %s23, 1
      %p62 = por %p60, %p61
      %p63 = scmp.ne.s32.totalorder %s54, %s55
      %p64 = scmp.eq.s32.totalorder %s23, 0
      %p65 = por %p63, %p64
      %p66 = scmp.ne.s32.totalorder %s54, %s55
      %p67 = scmp.eq.s32.totalorder %s24, 1
      %p68 = por %p66, %p67
      %p70 = scmp.ne.s32.totalorder %s55, %s69
      %p71 = scmp.eq.s32.totalorder %s24, 0
      %p72 = por %p70, %p71
      %s74 = sadd.s32 %s73, 1
      %p77 = scmp.eq.s32.totalorder %s18, 1
      %p78 = scmp.ne.s32.totalorder %s73, %s75
      %p79 = scmp.eq.s32.totalorder %s18, 0
      %p80 = por %p78, %p79
      %p81 = scmp.ne.s32.totalorder %s73, %s75
      %p82 = scmp.eq.s32.totalorder %s23, 1
      %p83 = por %p81, %p82
      %p84 = scmp.ne.s32.totalorder %s75, %s76
      %p85 = scmp.eq.s32.totalorder %s23, 0
      %p86 = por %p84, %p85
      %p87 = scmp.ne.s32.totalorder %s75, %s76
      %p88 = scmp.eq.s32.totalorder %s24, 1
      %p89 = por %p87, %p88
      %p91 = scmp.ne.s32.totalorder %s76, %s90
      %p92 = scmp.eq.s32.totalorder %s24, 0
      %p93 = por %p91, %p92
      %s95 = sadd.s32 %s94, 1
      %p98 = scmp.eq.s32.totalorder %s18, 1
      %p99 = scmp.ne.s32.totalorder %s94, %s96
      %p100 = scmp.eq.s32.totalorder %s18, 0
      %p101 = por %p99, %p100
      %p102 = scmp.ne.s32.totalorder %s94, %s96
      %p103 = scmp.eq.s32.totalorder %s23, 1
      %p104 = por %p102, %p103
      %p105 = scmp.ne.s32.totalorder %s96, %s97
      %p106 = scmp.eq.s32.totalorder %s23, 0
      %p107 = por %p105, %p106
      %p108 = scmp.ne.s32.totalorder %s96, %s97
      %p109 = scmp.eq.s32.totalorder %s24, 1
      %p110 = por %p108, %p109
      %p112 = scmp.ne.s32.totalorder %s97, %s111
      %p113 = scmp.eq.s32.totalorder %s24, 0
      %p114 = por %p112, %p113
      %s116 = sadd.s32 %s115, 1
      %p119 = scmp.eq.s32.totalorder %s18, 1
      %p120 = scmp.ne.s32.totalorder %s115, %s117
      %p121 = scmp.eq.s32.totalorder %s18, 0
      %p122 = por %p120, %p121
      %p123 = scmp.ne.s32.totalorder %s115, %s117
      %p124 = scmp.eq.s32.totalorder %s23, 1
      %p125 = por %p123, %p124
      %p126 = scmp.ne.s32.totalorder %s117, %s118
      %p127 = scmp.eq.s32.totalorder %s23, 0
      %p128 = por %p126, %p127
      %p129 = scmp.ne.s32.totalorder %s117, %s118
      %p130 = scmp.eq.s32.totalorder %s24, 1
      %p131 = por %p129, %p130
      %p133 = scmp.ne.s32.totalorder %s118, %s132
      %p134 = scmp.eq.s32.totalorder %s24, 0
      %p135 = por %p133, %p134
      %s137 = sadd.s32 %s136, 1
      %p140 = scmp.eq.s32.totalorder %s18, 1
      %p141 = scmp.ne.s32.totalorder %s136, %s138
      %p142 = scmp.eq.s32.totalorder %s18, 0
      %p143 = por %p141, %p142
      %p144 = scmp.ne.s32.totalorder %s136, %s138
      %p145 = scmp.eq.s32.totalorder %s23, 1
      %p146 = por %p144, %p145
      %p147 = scmp.ne.s32.totalorder %s138, %s139
      %p148 = scmp.eq.s32.totalorder %s23, 0
      %p149 = por %p147, %p148
      %p150 = scmp.ne.s32.totalorder %s138, %s139
      %p151 = scmp.eq.s32.totalorder %s24, 1
      %p152 = por %p150, %p151
      %p154 = scmp.ne.s32.totalorder %s139, %s153
      %p155 = scmp.eq.s32.totalorder %s24, 0
      %p156 = por %p154, %p155
      %s158 = sadd.s32 %s157, 1
      %p161 = scmp.eq.s32.totalorder %s18, 1
      %p162 = scmp.ne.s32.totalorder %s157, %s159
      %p163 = scmp.eq.s32.totalorder %s18, 0
      %p164 = por %p162, %p163
      %p165 = scmp.ne.s32.totalorder %s157, %s159
      %p166 = scmp.eq.s32.totalorder %s23, 1
      %p167 = por %p165, %p166
      %p168 = scmp.ne.s32.totalorder %s159, %s160
      %p169 = scmp.eq.s32.totalorder %s23, 0
      %p170 = por %p168, %p169
      %p171 = scmp.ne.s32.totalorder %s159, %s160
      %p172 = scmp.eq.s32.totalorder %s24, 1
      %p173 = por %p171, %p172
      %p175 = scmp.ne.s32.totalorder %s160, %s174
      %p176 = scmp.eq.s32.totalorder %s24, 0
      %p177 = por %p175, %p176
      %s179 = sadd.s32 %s178, 1
      %p182 = scmp.eq.s32.totalorder %s18, 1
      %p183 = scmp.ne.s32.totalorder %s178, %s180
      %p184 = scmp.eq.s32.totalorder %s18, 0
      %p185 = por %p183, %p184
      %p186 = scmp.ne.s32.totalorder %s178, %s180
      %p187 = scmp.eq.s32.totalorder %s23, 1
      %p188 = por %p186, %p187
      %p189 = scmp.ne.s32.totalorder %s180, %s181
      %p190 = scmp.eq.s32.totalorder %s23, 0
      %p191 = por %p189, %p190
      %p192 = scmp.ne.s32.totalorder %s180, %s181
      %p193 = scmp.eq.s32.totalorder %s24, 1
      %p194 = por %p192, %p193
      %p196 = scmp.ne.s32.totalorder %s181, %s195
      %p197 = scmp.eq.s32.totalorder %s24, 0
      %p198 = por %p196, %p197
      %s200 = sadd.s32 %s199, 1
      %p203 = scmp.eq.s32.totalorder %s18, 1
      %p204 = scmp.ne.s32.totalorder %s199, %s201
      %p205 = scmp.eq.s32.totalorder %s18, 0
      %p206 = por %p204, %p205
      %p207 = scmp.ne.s32.totalorder %s199, %s201
      %p208 = scmp.eq.s32.totalorder %s23, 1
      %p209 = por %p207, %p208
      %p210 = scmp.ne.s32.totalorder %s201, %s202
      %p211 = scmp.eq.s32.totalorder %s23, 0
      %p212 = por %p210, %p211
      %p213 = scmp.ne.s32.totalorder %s201, %s202
      %p214 = scmp.eq.s32.totalorder %s24, 1
      %p215 = por %p213, %p214
      %p217 = scmp.ne.s32.totalorder %s202, %s216
      %p218 = scmp.eq.s32.totalorder %s24, 0
      %p219 = por %p217, %p218
      %s220 = ssub.s32 %s18, %s25
      %p221 = scmp.eq.s32.totalorder %s220, 0
      %s223 = sadd.s32 %s222, 1
      %s224 = scalar_select %p221, %s222, %s223
      %p227 = pneg %p221
      %p228 = scmp.eq.s32.totalorder %s18, 1
      %p229 = por %p227, %p228
      %p230 = scmp.ne.s32.totalorder %s222, %s225
      %p231 = scmp.eq.s32.totalorder %s18, 0
      %p232 = por %p230, %p231
      %p233 = scmp.ne.s32.totalorder %s222, %s225
      %p234 = scmp.eq.s32.totalorder %s23, 1
      %p235 = por %p233, %p234
      %p236 = scmp.ne.s32.totalorder %s225, %s226
      %p237 = scmp.eq.s32.totalorder %s23, 0
      %p238 = por %p236, %p237
      %p239 = scmp.ne.s32.totalorder %s225, %s226
      %p240 = scmp.eq.s32.totalorder %s24, 1
      %p241 = por %p239, %p240
      %p243 = scmp.ne.s32.totalorder %s226, %s242
      %p244 = scmp.eq.s32.totalorder %s24, 0
      %p245 = por %p243, %p244
      %p246 = scmp.le.s32.totalorder 1, %s18
      %p247 = scmp.lt.s32.totalorder %s18, 3
      %p248 = pnand %p246, %p247
      %p249 = pneg %p248
      // Predicated region
      $region9: #{tpu_custom_call.1} parent=5 // pred_check
        _
      $region10: #{tpu_custom_call.1} parent=5 // pred_check_branch
        %251 = sbr.rel (%p248) target = $region12
      $region11: #{tpu_custom_call.1} parent=5 // pred_region
        %s252 = ssub.s32 %s18, 1
        // Predicated region
        $region13: #{tpu_custom_call.1} parent=11 // pred_check
          %p253 = pneg %p65
        $region14: #{tpu_custom_call.1} parent=11 // pred_check_branch
          %255 = sbr.rel (%p253) target = $region16
        $region15: #{tpu_custom_call.1} parent=11 // pred_region
          _
        $region16: #{tpu_custom_call.1} parent=11 // pred_fallthru
          _
        // Predicated region
        $region17: #{tpu_custom_call.1} parent=11 // pred_check
          %p256 = pneg %p86
        $region18: #{tpu_custom_call.1} parent=11 // pred_check_branch
          %258 = sbr.rel (%p256) target = $region20
        $region19: #{tpu_custom_call.1} parent=11 // pred_region
          _
        $region20: #{tpu_custom_call.1} parent=11 // pred_fallthru
          _
        // Predicated region
        $region21: #{tpu_custom_call.1} parent=11 // pred_check
          %p259 = pneg %p107
        $region22: #{tpu_custom_call.1} parent=11 // pred_check_branch
          %261 = sbr.rel (%p259) target = $region24
        $region23: #{tpu_custom_call.1} parent=11 // pred_region
          _
        $region24: #{tpu_custom_call.1} parent=11 // pred_fallthru
          _
        // Predicated region
        $region25: #{tpu_custom_call.1} parent=11 // pred_check
          %p262 = pneg %p128
        $region26: #{tpu_custom_call.1} parent=11 // pred_check_branch
          %264 = sbr.rel (%p262) target = $region28
        $region27: #{tpu_custom_call.1} parent=11 // pred_region
          _
        $region28: #{tpu_custom_call.1} parent=11 // pred_fallthru
          _
        // Predicated region
        $region29: #{tpu_custom_call.1} parent=11 // pred_check
          %p265 = pneg %p149
        $region30: #{tpu_custom_call.1} parent=11 // pred_check_branch
          %267 = sbr.rel (%p265) target = $region32
        $region31: #{tpu_custom_call.1} parent=11 // pred_region
          _
        $region32: #{tpu_custom_call.1} parent=11 // pred_fallthru
          _
        // Predicated region
        $region33: #{tpu_custom_call.1} parent=11 // pred_check
          %p268 = pneg %p170
        $region34: #{tpu_custom_call.1} parent=11 // pred_check_branch
          %270 = sbr.rel (%p268) target = $region36
        $region35: #{tpu_custom_call.1} parent=11 // pred_region
          _
        $region36: #{tpu_custom_call.1} parent=11 // pred_fallthru
          _
        // Predicated region
        $region37: #{tpu_custom_call.1} parent=11 // pred_check
          %p271 = pneg %p191
        $region38: #{tpu_custom_call.1} parent=11 // pred_check_branch
          %273 = sbr.rel (%p271) target = $region40
        $region39: #{tpu_custom_call.1} parent=11 // pred_region
          _
        $region40: #{tpu_custom_call.1} parent=11 // pred_fallthru
          _
        // Predicated region
        $region41: #{tpu_custom_call.1} parent=11 // pred_check
          %p274 = pneg %p212
        $region42: #{tpu_custom_call.1} parent=11 // pred_check_branch
          %276 = sbr.rel (%p274) target = $region44
        $region43: #{tpu_custom_call.1} parent=11 // pred_region
          _
        $region44: #{tpu_custom_call.1} parent=11 // pred_fallthru
          _
      $region12: #{tpu_custom_call.1} parent=5 // pred_fallthru
        _
      %p277 = scmp.lt.s32.totalorder %s18, 2
      // Predicated region
      $region45: #{tpu_custom_call.1} parent=5 // pred_check
        %p278 = pneg %p277
      $region46: #{tpu_custom_call.1} parent=5 // pred_check_branch
        %280 = sbr.rel (%p278) target = $region48
      $region47: #{tpu_custom_call.1} parent=5 // pred_region
        // Predicated region
        $region49: #{tpu_custom_call.1} parent=47 // pred_check
          %p281 = pneg %p38
        $region50: #{tpu_custom_call.1} parent=47 // pred_check_branch
          %283 = sbr.rel (%p281) target = $region52
        $region51: #{tpu_custom_call.1} parent=47 // pred_region
          %s284 = smul.u32 2, %s18
          %p285 = scmp.lt.s32.totalorder %s284, 3
          %s286 = scalar_select %p285, %s284, 3
          %s287 = smul.addr %s286, 8
          %s288 = scalar_lea.vmem %s0, %s287
          %s289 = smul.u32 2, %s18
        $region52: #{tpu_custom_call.1} parent=47 // pred_fallthru
          _
      $region48: #{tpu_custom_call.1} parent=5 // pred_fallthru
        _
      %p290 = scmp.le.s32.totalorder 1, %s18
      %p291 = scmp.lt.s32.totalorder %s18, 3
      %p292 = pnand %p290, %p291
      %p293 = pneg %p292
      // Predicated region
      $region53: #{tpu_custom_call.1} parent=5 // pred_check
        _
      $region54: #{tpu_custom_call.1} parent=5 // pred_check_branch
        %295 = sbr.rel (%p292) target = $region56
      $region55: #{tpu_custom_call.1} parent=5 // pred_region
        %s296 = ssub.s32 %s18, 1
        %s297 = smul.u32 2, %s23
        %p298 = scmp.lt.s32.totalorder %s297, 3
        %s299 = scalar_select %p298, %s297, 3
        %s300 = smul.addr %s299, 8
        %s301 = scalar_lea.vmem %s0, %s300
        %p302 = pneg %p44
        %p303 = pneg %p41
        %p304 = pneg %p65
        %p305 = pneg %p62
        %p306 = pneg %p86
        %p307 = pneg %p83
        %p308 = pneg %p107
        %p309 = pneg %p104
        %p310 = pneg %p128
        %p311 = pneg %p125
        %p312 = pneg %p149
        %p313 = pneg %p146
        %p314 = pneg %p170
        %p315 = pneg %p167
        %p316 = pneg %p191
        %p317 = pneg %p188
        %p318 = pneg %p212
        %p319 = pneg %p209
        %p320 = pneg %p238
        %p321 = pneg %p235
        %s322 = sand.u32 %s225, 1
        %s323 = scalar_lea.sflag [#allocation3], %s322
        %s324 = sand.u32 %s225, 1
        %s325 = smul.addr %s324, 4
        %s326 = scalar_lea.vmem [#allocation2], %s325
        %s327 = smul.u32 2, %s23
        %p328 = scmp.lt.s32.totalorder %s327, 3
        %s329 = scalar_select %p328, %s327, 3
        %s330 = smul.addr %s329, 8
        %s331 = scalar_lea.vmem %s0, %s330
        %s332 = smul.u32 2, %s23
        %s333 = smul.u32 2, %s23
        %v334 = vld [vmem:[%s331] sm:$0x1f]
        %v335 = vld [vmem:[%s331 + $0x8] sm:$0x1f]
        %v336 = vld [vmem:[%s1] sm:$0xff]
        %v337 = vld [vmem:[%s1 + $0x8] sm:$0xff]
        %v338 = vld [vmem:[%s1 + $0x10] sm:$0xff]
        %v339 = vld [vmem:[%s1 + $0x18] sm:$0xff]
        %v340 = vld [vmem:[%s1 + $0x20] sm:$0xff]
        %v341 = vld [vmem:[%s1 + $0x28] sm:$0xff]
        %v342 = vld [vmem:[%s1 + $0x30] sm:$0xff]
        %v343 = vld [vmem:[%s1 + $0x38] sm:$0xff]
        %v344 = vld [vmem:[%s2] sm:$0xff]
        %v345 = vld [vmem:[%s2 + $0x8] sm:$0xff]
        %v346 = vld [vmem:[%s2 + $0x10] sm:$0xff]
        %v347 = vld [vmem:[%s2 + $0x18] sm:$0xff]
        %v348 = vld [vmem:[%s2 + $0x20] sm:$0xff]
        %v349 = vld [vmem:[%s2 + $0x28] sm:$0xff]
        %v350 = vld [vmem:[%s2 + $0x30] sm:$0xff]
        %v351 = vld [vmem:[%s2 + $0x38] sm:$0xff]
        %353 = vset.pattern.permute.xlu0 0
        %354 = vperm.xlu0 %353, %v344
        %v355 = vpop.permute.xlu0 %354
        %358 = vset.pattern.permute.xlu0 0
        %359 = vperm.xlu0 %358, %v345
        %v360 = vpop.permute.xlu0 %359
        %363 = vset.pattern.permute.xlu0 0
        %364 = vperm.xlu0 %363, %v346
        %v365 = vpop.permute.xlu0 %364
        %368 = vset.pattern.permute.xlu0 0
        %369 = vperm.xlu0 %368, %v347
        %v370 = vpop.permute.xlu0 %369
        %373 = vset.pattern.permute.xlu0 0
        %374 = vperm.xlu0 %373, %v348
        %v375 = vpop.permute.xlu0 %374
        %378 = vset.pattern.permute.xlu0 0
        %379 = vperm.xlu0 %378, %v349
        %v380 = vpop.permute.xlu0 %379
        %383 = vset.pattern.permute.xlu0 0
        %384 = vperm.xlu0 %383, %v350
        %v385 = vpop.permute.xlu0 %384
        %388 = vset.pattern.permute.xlu0 0
        %389 = vperm.xlu0 %388, %v351
        %v390 = vpop.permute.xlu0 %389
        %vm392 = vcmask 39936
        %v394 = vsel %vm392, %v336, 0
        %v397 = vsel %vm392, %v337, 0
        %v400 = vsel %vm392, %v338, 0
        %v403 = vsel %vm392, %v339, 0
        %v406 = vsel %vm392, %v340, 0
        %v409 = vsel %vm392, %v341, 0
        %v412 = vsel %vm392, %v342, 0
        %v415 = vsel %vm392, %v343, 0
        %vm417 = vcmask 1044480
        %v419 = vsel %vm417, %v334, 0
        %v422 = vsel %vm417, %v335, 0
        %424 = vmatpush.msra.mxu0 0.0
        %425 = vmatpush.msra.mxu0 0.0
        %426 = vmatpush.msra.mxu0 0.0
        %427 = vmatpush.msra.mxu0 0.0
        %428 = vmatpush.msra.mxu0 0.0
        %429 = vmatpush.msra.mxu0 0.0
        %430 = vmatpush.msra.mxu0 0.0
        %431 = vmatpush.msra.mxu0 0.0
        %432 = vmatpush.msra.mxu0 0.0
        %433 = vmatpush.msra.mxu0 0.0
        %434 = vmatpush.msra.mxu0 0.0
        %435 = vmatpush.msra.mxu0 0.0
        %436 = vmatpush.msra.mxu0 0.0
        %437 = vmatpush.msra.mxu0 0.0
        %438 = vmatpush.msra.mxu0 0.0
        %439 = vmatpush.msra.mxu0 %v419
        %440 = vmatmul.f32.gmra.mxu0 %v394
        %v441 = vpop.f32.mrf.mxu0
        %v442 = vadd.f32 %v355, %v441
        %443 = vmatmul.f32.gmra.mxu0 %v397
        %v444 = vpop.f32.mrf.mxu0
        %v445 = vadd.f32 %v360, %v444
        %446 = vmatmul.f32.gmra.mxu0 %v400
        %v447 = vpop.f32.mrf.mxu0
        %v448 = vadd.f32 %v365, %v447
        %449 = vmatmul.f32.gmra.mxu0 %v403
        %v450 = vpop.f32.mrf.mxu0
        %v451 = vadd.f32 %v370, %v450
        %452 = vmatmul.f32.gmra.mxu0 %v406
        %v453 = vpop.f32.mrf.mxu0
        %v454 = vadd.f32 %v375, %v453
        %455 = vmatmul.f32.gmra.mxu0 %v409
        %v456 = vpop.f32.mrf.mxu0
        %v457 = vadd.f32 %v380, %v456
        %458 = vmatmul.f32.gmra.mxu0 %v412
        %v459 = vpop.f32.mrf.mxu0
        %v460 = vadd.f32 %v385, %v459
        %461 = vmatmul.f32.gmra.mxu0 %v415
        %v462 = vpop.f32.mrf.mxu0
        %v463 = vadd.f32 %v390, %v462
        %464 = vdwg.mxu0
        %465 = vmatpush.msra.mxu0 0.0
        %466 = vmatpush.msra.mxu0 0.0
        %467 = vmatpush.msra.mxu0 0.0
        %468 = vmatpush.msra.mxu0 0.0
        %469 = vmatpush.msra.mxu0 0.0
        %470 = vmatpush.msra.mxu0 0.0
        %471 = vmatpush.msra.mxu0 0.0
        %472 = vmatpush.msra.mxu0 0.0
        %473 = vmatpush.msra.mxu0 0.0
        %474 = vmatpush.msra.mxu0 0.0
        %475 = vmatpush.msra.mxu0 0.0
        %476 = vmatpush.msra.mxu0 0.0
        %477 = vmatpush.msra.mxu0 0.0
        %478 = vmatpush.msra.mxu0 0.0
        %479 = vmatpush.msra.mxu0 0.0
        %480 = vmatpush.msra.mxu0 %v422
        %481 = vmatmul.f32.gmra.mxu0 %v394
        %v482 = vpop.f32.mrf.mxu0
        %v483 = vadd.f32 %v355, %v482
        %484 = vmatmul.f32.gmra.mxu0 %v397
        %v485 = vpop.f32.mrf.mxu0
        %v486 = vadd.f32 %v360, %v485
        %487 = vmatmul.f32.gmra.mxu0 %v400
        %v488 = vpop.f32.mrf.mxu0
        %v489 = vadd.f32 %v365, %v488
        %490 = vmatmul.f32.gmra.mxu0 %v403
        %v491 = vpop.f32.mrf.mxu0
        %v492 = vadd.f32 %v370, %v491
        %493 = vmatmul.f32.gmra.mxu0 %v406
        %v494 = vpop.f32.mrf.mxu0
        %v495 = vadd.f32 %v375, %v494
        %496 = vmatmul.f32.gmra.mxu0 %v409
        %v497 = vpop.f32.mrf.mxu0
        %v498 = vadd.f32 %v380, %v497
        %499 = vmatmul.f32.gmra.mxu0 %v412
        %v500 = vpop.f32.mrf.mxu0
        %v501 = vadd.f32 %v385, %v500
        %502 = vmatmul.f32.gmra.mxu0 %v415
        %v503 = vpop.f32.mrf.mxu0
        %v504 = vadd.f32 %v390, %v503
        %505 = vdwg.mxu0
        %v506 = vmax.f32 %v442, 0.0
        %v507 = vmax.f32 %v483, 0.0
        %v508 = vmax.f32 %v445, 0.0
        %v509 = vmax.f32 %v486, 0.0
        %v510 = vmax.f32 %v448, 0.0
        %v511 = vmax.f32 %v489, 0.0
        %v512 = vmax.f32 %v451, 0.0
        %v513 = vmax.f32 %v492, 0.0
        %v514 = vmax.f32 %v454, 0.0
        %v515 = vmax.f32 %v495, 0.0
        %v516 = vmax.f32 %v457, 0.0
        %v517 = vmax.f32 %v498, 0.0
        %v518 = vmax.f32 %v460, 0.0
        %v519 = vmax.f32 %v501, 0.0
        %v520 = vmax.f32 %v463, 0.0
        %v521 = vmax.f32 %v504, 0.0
        %v522 = vld [vmem:[%s3] sm:$0xff]
        %v523 = vld [vmem:[%s3 + $0x8] sm:$0xff]
        %v524 = vld [vmem:[%s3 + $0x10] sm:$0xff]
        %v525 = vld [vmem:[%s3 + $0x18] sm:$0xff]
        %v526 = vld [vmem:[%s3 + $0x20] sm:$0xff]
        %v527 = vld [vmem:[%s3 + $0x28] sm:$0xff]
        %v528 = vld [vmem:[%s3 + $0x30] sm:$0xff]
        %v529 = vld [vmem:[%s3 + $0x38] sm:$0xff]
        %v530 = vld [vmem:[%s4] sm:$0xff]
        %v531 = vld [vmem:[%s4 + $0x8] sm:$0xff]
        %v532 = vld [vmem:[%s4 + $0x10] sm:$0xff]
        %v533 = vld [vmem:[%s4 + $0x18] sm:$0xff]
        %v534 = vld [vmem:[%s4 + $0x20] sm:$0xff]
        %v535 = vld [vmem:[%s4 + $0x28] sm:$0xff]
        %v536 = vld [vmem:[%s4 + $0x30] sm:$0xff]
        %v537 = vld [vmem:[%s4 + $0x38] sm:$0xff]
        %539 = vset.pattern.permute.xlu0 0
        %540 = vperm.xlu0 %539, %v530
        %v541 = vpop.permute.xlu0 %540
        %544 = vset.pattern.permute.xlu0 0
        %545 = vperm.xlu0 %544, %v531
        %v546 = vpop.permute.xlu0 %545
        %549 = vset.pattern.permute.xlu0 0
        %550 = vperm.xlu0 %549, %v532
        %v551 = vpop.permute.xlu0 %550
        %554 = vset.pattern.permute.xlu0 0
        %555 = vperm.xlu0 %554, %v533
        %v556 = vpop.permute.xlu0 %555
        %559 = vset.pattern.permute.xlu0 0
        %560 = vperm.xlu0 %559, %v534
        %v561 = vpop.permute.xlu0 %560
        %564 = vset.pattern.permute.xlu0 0
        %565 = vperm.xlu0 %564, %v535
        %v566 = vpop.permute.xlu0 %565
        %569 = vset.pattern.permute.xlu0 0
        %570 = vperm.xlu0 %569, %v536
        %v571 = vpop.permute.xlu0 %570
        %574 = vset.pattern.permute.xlu0 0
        %575 = vperm.xlu0 %574, %v537
        %v576 = vpop.permute.xlu0 %575
        %vm578 = vcmask 523264
        %v580 = vsel %vm578, %v522, 0
        %v583 = vsel %vm578, %v523, 0
        %v586 = vsel %vm578, %v524, 0
        %v589 = vsel %vm578, %v525, 0
        %v592 = vsel %vm578, %v526, 0
        %v595 = vsel %vm578, %v527, 0
        %v598 = vsel %vm578, %v528, 0
        %v601 = vsel %vm578, %v529, 0
        %603 = vmatpush.msra.mxu0 0.0
        %604 = vmatpush.msra.mxu0 0.0
        %605 = vmatpush.msra.mxu0 0.0
        %606 = vmatpush.msra.mxu0 0.0
        %607 = vmatpush.msra.mxu0 0.0
        %608 = vmatpush.msra.mxu0 0.0
        %609 = vmatpush.msra.mxu0 0.0
        %610 = vmatpush.msra.mxu0 0.0
        %611 = vmatpush.msra.mxu0 %v520
        %612 = vmatpush.msra.mxu0 %v518
        %613 = vmatpush.msra.mxu0 %v516
        %614 = vmatpush.msra.mxu0 %v514
        %615 = vmatpush.msra.mxu0 %v512
        %616 = vmatpush.msra.mxu0 %v510
        %617 = vmatpush.msra.mxu0 %v508
        %618 = vmatpush.msra.mxu0 %v506
        %619 = vmatmul.f32.gmra.mxu0 %v580
        %v620 = vpop.f32.mrf.mxu0
        %v621 = vadd.f32 %v541, %v620
        %622 = vmatmul.f32.gmra.mxu0 %v583
        %v623 = vpop.f32.mrf.mxu0
        %v624 = vadd.f32 %v546, %v623
        %625 = vmatmul.f32.gmra.mxu0 %v586
        %v626 = vpop.f32.mrf.mxu0
        %v627 = vadd.f32 %v551, %v626
        %628 = vmatmul.f32.gmra.mxu0 %v589
        %v629 = vpop.f32.mrf.mxu0
        %v630 = vadd.f32 %v556, %v629
        %631 = vmatmul.f32.gmra.mxu0 %v592
        %v632 = vpop.f32.mrf.mxu0
        %v633 = vadd.f32 %v561, %v632
        %634 = vmatmul.f32.gmra.mxu0 %v595
        %v635 = vpop.f32.mrf.mxu0
        %v636 = vadd.f32 %v566, %v635
        %637 = vmatmul.f32.gmra.mxu0 %v598
        %v638 = vpop.f32.mrf.mxu0
        %v639 = vadd.f32 %v571, %v638
        %640 = vmatmul.f32.gmra.mxu0 %v601
        %v641 = vpop.f32.mrf.mxu0
        %v642 = vadd.f32 %v576, %v641
        %643 = vdwg.mxu0
        %644 = vmatpush.msra.mxu0 0.0
        %645 = vmatpush.msra.mxu0 0.0
        %646 = vmatpush.msra.mxu0 0.0
        %647 = vmatpush.msra.mxu0 0.0
        %648 = vmatpush.msra.mxu0 0.0
        %649 = vmatpush.msra.mxu0 0.0
        %650 = vmatpush.msra.mxu0 0.0
        %651 = vmatpush.msra.mxu0 0.0
        %652 = vmatpush.msra.mxu0 %v521
        %653 = vmatpush.msra.mxu0 %v519
        %654 = vmatpush.msra.mxu0 %v517
        %655 = vmatpush.msra.mxu0 %v515
        %656 = vmatpush.msra.mxu0 %v513
        %657 = vmatpush.msra.mxu0 %v511
        %658 = vmatpush.msra.mxu0 %v509
        %659 = vmatpush.msra.mxu0 %v507
        %660 = vmatmul.f32.gmra.mxu0 %v580
        %v661 = vpop.f32.mrf.mxu0
        %v662 = vadd.f32 %v541, %v661
        %663 = vmatmul.f32.gmra.mxu0 %v583
        %v664 = vpop.f32.mrf.mxu0
        %v665 = vadd.f32 %v546, %v664
        %666 = vmatmul.f32.gmra.mxu0 %v586
        %v667 = vpop.f32.mrf.mxu0
        %v668 = vadd.f32 %v551, %v667
        %669 = vmatmul.f32.gmra.mxu0 %v589
        %v670 = vpop.f32.mrf.mxu0
        %v671 = vadd.f32 %v556, %v670
        %672 = vmatmul.f32.gmra.mxu0 %v592
        %v673 = vpop.f32.mrf.mxu0
        %v674 = vadd.f32 %v561, %v673
        %675 = vmatmul.f32.gmra.mxu0 %v595
        %v676 = vpop.f32.mrf.mxu0
        %v677 = vadd.f32 %v566, %v676
        %678 = vmatmul.f32.gmra.mxu0 %v598
        %v679 = vpop.f32.mrf.mxu0
        %v680 = vadd.f32 %v571, %v679
        %681 = vmatmul.f32.gmra.mxu0 %v601
        %v682 = vpop.f32.mrf.mxu0
        %v683 = vadd.f32 %v576, %v682
        %684 = vdwg.mxu0
        %v685 = vmax.f32 %v621, 0.0
        %v686 = vmax.f32 %v662, 0.0
        %v687 = vmax.f32 %v624, 0.0
        %v688 = vmax.f32 %v665, 0.0
        %v689 = vmax.f32 %v627, 0.0
        %v690 = vmax.f32 %v668, 0.0
        %v691 = vmax.f32 %v630, 0.0
        %v692 = vmax.f32 %v671, 0.0
        %v693 = vmax.f32 %v633, 0.0
        %v694 = vmax.f32 %v674, 0.0
        %v695 = vmax.f32 %v636, 0.0
        %v696 = vmax.f32 %v677, 0.0
        %v697 = vmax.f32 %v639, 0.0
        %v698 = vmax.f32 %v680, 0.0
        %v699 = vmax.f32 %v642, 0.0
        %v700 = vmax.f32 %v683, 0.0
        %v701 = vld [vmem:[%s5] sm:$0xff]
        %v702 = vld [vmem:[%s5 + $0x8] sm:$0xff]
        %v703 = vld [vmem:[%s5 + $0x10] sm:$0xff]
        %v704 = vld [vmem:[%s5 + $0x18] sm:$0xff]
        %v705 = vld [vmem:[%s5 + $0x20] sm:$0xff]
        %v706 = vld [vmem:[%s5 + $0x28] sm:$0xff]
        %v707 = vld [vmem:[%s5 + $0x30] sm:$0xff]
        %v708 = vld [vmem:[%s5 + $0x38] sm:$0xff]
        %v709 = vld [vmem:[%s6] sm:$0xff]
        %v710 = vld [vmem:[%s6 + $0x8] sm:$0xff]
        %v711 = vld [vmem:[%s6 + $0x10] sm:$0xff]
        %v712 = vld [vmem:[%s6 + $0x18] sm:$0xff]
        %v713 = vld [vmem:[%s6 + $0x20] sm:$0xff]
        %v714 = vld [vmem:[%s6 + $0x28] sm:$0xff]
        %v715 = vld [vmem:[%s6 + $0x30] sm:$0xff]
        %v716 = vld [vmem:[%s6 + $0x38] sm:$0xff]
        %718 = vset.pattern.permute.xlu0 0
        %719 = vperm.xlu0 %718, %v709
        %v720 = vpop.permute.xlu0 %719
        %723 = vset.pattern.permute.xlu0 0
        %724 = vperm.xlu0 %723, %v710
        %v725 = vpop.permute.xlu0 %724
        %728 = vset.pattern.permute.xlu0 0
        %729 = vperm.xlu0 %728, %v711
        %v730 = vpop.permute.xlu0 %729
        %733 = vset.pattern.permute.xlu0 0
        %734 = vperm.xlu0 %733, %v712
        %v735 = vpop.permute.xlu0 %734
        %738 = vset.pattern.permute.xlu0 0
        %739 = vperm.xlu0 %738, %v713
        %v740 = vpop.permute.xlu0 %739
        %743 = vset.pattern.permute.xlu0 0
        %744 = vperm.xlu0 %743, %v714
        %v745 = vpop.permute.xlu0 %744
        %748 = vset.pattern.permute.xlu0 0
        %749 = vperm.xlu0 %748, %v715
        %v750 = vpop.permute.xlu0 %749
        %753 = vset.pattern.permute.xlu0 0
        %754 = vperm.xlu0 %753, %v716
        %v755 = vpop.permute.xlu0 %754
        %v758 = vsel %vm578, %v701, 0
        %v761 = vsel %vm578, %v702, 0
        %v764 = vsel %vm578, %v703, 0
        %v767 = vsel %vm578, %v704, 0
        %v770 = vsel %vm578, %v705, 0
        %v773 = vsel %vm578, %v706, 0
        %v776 = vsel %vm578, %v707, 0
        %v779 = vsel %vm578, %v708, 0
        %781 = vmatpush.msra.mxu0 0.0
        %782 = vmatpush.msra.mxu0 0.0
        %783 = vmatpush.msra.mxu0 0.0
        %784 = vmatpush.msra.mxu0 0.0
        %785 = vmatpush.msra.mxu0 0.0
        %786 = vmatpush.msra.mxu0 0.0
        %787 = vmatpush.msra.mxu0 0.0
        %788 = vmatpush.msra.mxu0 0.0
        %789 = vmatpush.msra.mxu0 %v699
        %790 = vmatpush.msra.mxu0 %v697
        %791 = vmatpush.msra.mxu0 %v695
        %792 = vmatpush.msra.mxu0 %v693
        %793 = vmatpush.msra.mxu0 %v691
        %794 = vmatpush.msra.mxu0 %v689
        %795 = vmatpush.msra.mxu0 %v687
        %796 = vmatpush.msra.mxu0 %v685
        %797 = vmatmul.f32.gmra.mxu0 %v758
        %v798 = vpop.f32.mrf.mxu0
        %v799 = vadd.f32 %v720, %v798
        %800 = vmatmul.f32.gmra.mxu0 %v761
        %v801 = vpop.f32.mrf.mxu0
        %v802 = vadd.f32 %v725, %v801
        %803 = vmatmul.f32.gmra.mxu0 %v764
        %v804 = vpop.f32.mrf.mxu0
        %v805 = vadd.f32 %v730, %v804
        %806 = vmatmul.f32.gmra.mxu0 %v767
        %v807 = vpop.f32.mrf.mxu0
        %v808 = vadd.f32 %v735, %v807
        %809 = vmatmul.f32.gmra.mxu0 %v770
        %v810 = vpop.f32.mrf.mxu0
        %v811 = vadd.f32 %v740, %v810
        %812 = vmatmul.f32.gmra.mxu0 %v773
        %v813 = vpop.f32.mrf.mxu0
        %v814 = vadd.f32 %v745, %v813
        %815 = vmatmul.f32.gmra.mxu0 %v776
        %v816 = vpop.f32.mrf.mxu0
        %v817 = vadd.f32 %v750, %v816
        %818 = vmatmul.f32.gmra.mxu0 %v779
        %v819 = vpop.f32.mrf.mxu0
        %v820 = vadd.f32 %v755, %v819
        %821 = vdwg.mxu0
        %822 = vmatpush.msra.mxu0 0.0
        %823 = vmatpush.msra.mxu0 0.0
        %824 = vmatpush.msra.mxu0 0.0
        %825 = vmatpush.msra.mxu0 0.0
        %826 = vmatpush.msra.mxu0 0.0
        %827 = vmatpush.msra.mxu0 0.0
        %828 = vmatpush.msra.mxu0 0.0
        %829 = vmatpush.msra.mxu0 0.0
        %830 = vmatpush.msra.mxu0 %v700
        %831 = vmatpush.msra.mxu0 %v698
        %832 = vmatpush.msra.mxu0 %v696
        %833 = vmatpush.msra.mxu0 %v694
        %834 = vmatpush.msra.mxu0 %v692
        %835 = vmatpush.msra.mxu0 %v690
        %836 = vmatpush.msra.mxu0 %v688
        %837 = vmatpush.msra.mxu0 %v686
        %838 = vmatmul.f32.gmra.mxu0 %v758
        %v839 = vpop.f32.mrf.mxu0
        %v840 = vadd.f32 %v720, %v839
        %841 = vmatmul.f32.gmra.mxu0 %v761
        %v842 = vpop.f32.mrf.mxu0
        %v843 = vadd.f32 %v725, %v842
        %844 = vmatmul.f32.gmra.mxu0 %v764
        %v845 = vpop.f32.mrf.mxu0
        %v846 = vadd.f32 %v730, %v845
        %847 = vmatmul.f32.gmra.mxu0 %v767
        %v848 = vpop.f32.mrf.mxu0
        %v849 = vadd.f32 %v735, %v848
        %850 = vmatmul.f32.gmra.mxu0 %v770
        %v851 = vpop.f32.mrf.mxu0
        %v852 = vadd.f32 %v740, %v851
        %853 = vmatmul.f32.gmra.mxu0 %v773
        %v854 = vpop.f32.mrf.mxu0
        %v855 = vadd.f32 %v745, %v854
        %856 = vmatmul.f32.gmra.mxu0 %v776
        %v857 = vpop.f32.mrf.mxu0
        %v858 = vadd.f32 %v750, %v857
        %859 = vmatmul.f32.gmra.mxu0 %v779
        %v860 = vpop.f32.mrf.mxu0
        %v861 = vadd.f32 %v755, %v860
        %862 = vdwg.mxu0
        %v863 = vmax.f32 %v799, 0.0
        %v864 = vmax.f32 %v840, 0.0
        %v865 = vmax.f32 %v802, 0.0
        %v866 = vmax.f32 %v843, 0.0
        %v867 = vmax.f32 %v805, 0.0
        %v868 = vmax.f32 %v846, 0.0
        %v869 = vmax.f32 %v808, 0.0
        %v870 = vmax.f32 %v849, 0.0
        %v871 = vmax.f32 %v811, 0.0
        %v872 = vmax.f32 %v852, 0.0
        %v873 = vmax.f32 %v814, 0.0
        %v874 = vmax.f32 %v855, 0.0
        %v875 = vmax.f32 %v817, 0.0
        %v876 = vmax.f32 %v858, 0.0
        %v877 = vmax.f32 %v820, 0.0
        %v878 = vmax.f32 %v861, 0.0
        %v879 = vld [vmem:[%s7] sm:$0x3]
        %v880 = vld [vmem:[%s8] sm:$0x3]
        %882 = vset.pattern.permute.xlu0 0
        %883 = vperm.xlu0 %882, %v880
        %v884 = vpop.permute.xlu0 %883
        %v887 = vsel %vm578, %v879, 0
        %889 = vmatpush.msra.mxu0 0.0
        %890 = vmatpush.msra.mxu0 0.0
        %891 = vmatpush.msra.mxu0 0.0
        %892 = vmatpush.msra.mxu0 0.0
        %893 = vmatpush.msra.mxu0 0.0
        %894 = vmatpush.msra.mxu0 0.0
        %895 = vmatpush.msra.mxu0 0.0
        %896 = vmatpush.msra.mxu0 0.0
        %897 = vmatpush.msra.mxu0 %v877
        %898 = vmatpush.msra.mxu0 %v875
        %899 = vmatpush.msra.mxu0 %v873
        %900 = vmatpush.msra.mxu0 %v871
        %901 = vmatpush.msra.mxu0 %v869
        %902 = vmatpush.msra.mxu0 %v867
        %903 = vmatpush.msra.mxu0 %v865
        %904 = vmatpush.msra.mxu0 %v863
        %905 = vmatmul.f32.gmra.mxu0 %v887
        %v906 = vpop.f32.mrf.mxu0
        %v907 = vadd.f32 %v884, %v906
        %908 = vdwg.mxu0
        %909 = vmatpush.msra.mxu0 0.0
        %910 = vmatpush.msra.mxu0 0.0
        %911 = vmatpush.msra.mxu0 0.0
        %912 = vmatpush.msra.mxu0 0.0
        %913 = vmatpush.msra.mxu0 0.0
        %914 = vmatpush.msra.mxu0 0.0
        %915 = vmatpush.msra.mxu0 0.0
        %916 = vmatpush.msra.mxu0 0.0
        %917 = vmatpush.msra.mxu0 %v878
        %918 = vmatpush.msra.mxu0 %v876
        %919 = vmatpush.msra.mxu0 %v874
        %920 = vmatpush.msra.mxu0 %v872
        %921 = vmatpush.msra.mxu0 %v870
        %922 = vmatpush.msra.mxu0 %v868
        %923 = vmatpush.msra.mxu0 %v866
        %924 = vmatpush.msra.mxu0 %v864
        %925 = vmatmul.f32.gmra.mxu0 %v887
        %v926 = vpop.f32.mrf.mxu0
        %v927 = vadd.f32 %v884, %v926
        %928 = vdwg.mxu0
        %v931 = vrot.slane %v927, 6
        %vm932 = vcmask 1041408
        %v933 = vsel %vm932, %v907, %v931
        %935 = vst [vmem:[%s326] sm:$0xf] %v933
        %s936 = sand.u32 %s225, 1
        %s937 = scalar_lea.sflag [#allocation3], %s936
        %s938 = sand.u32 %s225, 1
        %s939 = smul.addr %s938, 4
        %s940 = scalar_lea.vmem [#allocation2], %s939
        // Predicated region
        $region57: #{tpu_custom_call.1} parent=55 // pred_check
          %p941 = pneg %p235
        $region58: #{tpu_custom_call.1} parent=55 // pred_check_branch
          %943 = sbr.rel (%p941) target = $region60
        $region59: #{tpu_custom_call.1} parent=55 // pred_region
          %s944 = smul.u32 2, %s23
          %946 = vsyncadd %s937, 0
          %s947 = smul.addr %s944, 2
          %s948 = scalar_lea.hbm %s9, %s947
          %s950 = sshll.u32 %s940, 4
          %s951 = int_to_ptr.vmem [resolvable:$true] %s950
          %s952 = sshll.u32 %s948, 4
          %s953 = int_to_ptr.hbm [resolvable:$true] %s952
          %955 = dma.vmem_to_hbm [thread:$0]  %s951, 64, %s953, %s937
        $region60: #{tpu_custom_call.1} parent=55 // pred_fallthru
          _
      $region56: #{tpu_custom_call.1} parent=5 // pred_fallthru
        _
      %p956 = scmp.le.s32.totalorder 2, %s18
      // Predicated region
      $region61: #{tpu_custom_call.1} parent=5 // pred_check
        %p957 = pneg %p956
      $region62: #{tpu_custom_call.1} parent=5 // pred_check_branch
        %959 = sbr.rel (%p957) target = $region64
      $region63: #{tpu_custom_call.1} parent=5 // pred_region
        %s960 = ssub.s32 %s18, 2
        // Predicated region
        $region65: #{tpu_custom_call.1} parent=63 // pred_check
          %p961 = pneg %p241
        $region66: #{tpu_custom_call.1} parent=63 // pred_check_branch
          %963 = sbr.rel (%p961) target = $region68
        $region67: #{tpu_custom_call.1} parent=63 // pred_region
          %s964 = sand.u32 %s226, 1
          %s965 = scalar_lea.sflag [#allocation3], %s964
          %s966 = sand.u32 %s226, 1
          %s967 = smul.addr %s966, 4
          %s968 = scalar_lea.vmem [#allocation2], %s967
          %970 = dma.done %s965, 64
        $region68: #{tpu_custom_call.1} parent=63 // pred_fallthru
          _
      $region64: #{tpu_custom_call.1} parent=5 // pred_fallthru
        _
    $region6: #{tpu_custom_call.1} parent=1 // loop_footer
      %s22 = sadd.s32 1, %s18
    $region7: #{tpu_custom_call.1} parent=1 // loop_footer_branch
      %17 = sbr.rel target = $region3
    $region8: #{tpu_custom_call.1} parent=1 // loop_exit
      _
    %971 = vsyncpa [#allocation3], 1
    %s972 = scalar_lea.sflag [#allocation3], 1
    %973 = vsyncpa %s972, 1

</llo_original>
